<compile_context>
chip_gen: v5e
topology: v5e:2x2
jax: 0.10.0
libtpu: 0.0.40
codegen_flags: <defaults>
</compile_context>

<pallas_src>
import functools

import jax
import jax.numpy as jnp
from jax.experimental import pallas as pl
from jax.experimental.pallas import tpu as pltpu


def _trans_kernel(x_ref, w_ref, b_ref, o_ref, *, out_dim):
    """Unrolled VPU linear head: o[:, j] = sum(x * w[j, :], -1) + b[j]."""
    x = x_ref[...].astype(jnp.float32)            # (bB, nz) in VMEM
    cols = []
    for j in range(out_dim):                      # out_dim <= 3, fully unrolled
        w_row = w_ref[j, :].astype(jnp.float32)   # (nz,) static sublane slice
        # VPU multiply + XLU lane reduce (no MXU), f32 accumulate.
        col = jnp.sum(x * w_row, axis=-1, keepdims=True)   # (bB, 1)
        cols.append(col + b_ref[j])               # bias: SMEM scalar broadcast
    o_ref[...] = jnp.concatenate(cols, axis=-1).astype(o_ref.dtype)


def trans_predictor(feat, weight, bias, *, block_b=128):
    """feat: (B, nz); weight: (out, nz) PyTorch nn.Linear layout; bias: (out,)."""
    B, nz = feat.shape
    out_dim, nz_w = weight.shape
    assert nz_w == nz and bias.shape == (out_dim,)

    kernel = functools.partial(_trans_kernel, out_dim=out_dim)
    cost = pl.CostEstimate(
        flops=2 * B * nz * out_dim,
        bytes_accessed=(B * nz + out_dim * nz + out_dim + B * out_dim)
        * feat.dtype.itemsize,
        transcendentals=0,
    )

    if B <= block_b:
        # Gridless: whole arrays resident in VMEM/SMEM for one body invocation.
        # No grid, no double-buffering, no semaphore bookkeeping.
        return pl.pallas_call(
            kernel,
            out_shape=jax.ShapeDtypeStruct((B, out_dim), feat.dtype),
            in_specs=[
                pl.BlockSpec(memory_space=pltpu.MemorySpace.VMEM),  # feat
                pl.BlockSpec(memory_space=pltpu.MemorySpace.VMEM),  # weight (out, nz)
                pl.BlockSpec(memory_space=pltpu.MemorySpace.SMEM),  # bias (out,) scalars
            ],
            out_specs=pl.BlockSpec(memory_space=pltpu.MemorySpace.VMEM),
            cost_estimate=cost,
        )(feat, weight, bias)

    # Large-B path: 1-D "parallel" grid over batch blocks (v7x: both TCs busy).
    grid = (pl.cdiv(B, block_b),)
    return pl.pallas_call(
        kernel,
        out_shape=jax.ShapeDtypeStruct((B, out_dim), feat.dtype),
        grid=grid,
        in_specs=[
            pl.BlockSpec((block_b, nz), lambda i: (i, 0)),       # feat tile
            pl.BlockSpec((out_dim, nz), lambda i: (0, 0)),       # whole weight
            pl.BlockSpec(memory_space=pltpu.MemorySpace.SMEM),   # bias scalars
        ],
        out_specs=pl.BlockSpec((block_b, out_dim), lambda i: (i, 0)),
        compiler_params=pltpu.CompilerParams(dimension_semantics=("parallel",)),
        cost_estimate=cost,
    )(feat, weight, bias)


if __name__ == "__main__":
    key = jax.random.PRNGKey(0)
    k_feat, k_w, k_b, k_feat_big = jax.random.split(key, 4)

    # Small shapes consistent with the module: batch=8, nz=32, orth=True -> out=2.
    B, NZ, OUT = 8, 32, 2
    bound = 1.0 / jnp.sqrt(jnp.float32(NZ))
    weight = jax.random.uniform(k_w, (OUT, NZ), jnp.float32, -bound, bound)
    bias = jax.random.uniform(k_b, (OUT,), jnp.float32, -bound, bound)
    feat = jax.random.normal(k_feat, (B, NZ), jnp.float32)

    out = jax.block_until_ready(trans_predictor(feat, weight, bias))
    ref = feat @ weight.T + bias
    assert out.shape == (B, OUT)
    assert jnp.allclose(out, ref, atol=1e-5, rtol=1e-5)

    # Also exercise the large-batch gridded ("parallel" over batch) path.
    B_BIG = 256
    feat_big = jax.random.normal(k_feat_big, (B_BIG, NZ), jnp.float32)
    out_big = jax.block_until_ready(trans_predictor(feat_big, weight, bias))
    ref_big = feat_big @ weight.T + bias
    assert out_big.shape == (B_BIG, OUT)
    assert jnp.allclose(out_big, ref_big, atol=1e-5, rtol=1e-5)

    print("KERNEL_OK")
</pallas_src>

<mosaic_0001>
module attributes {stable_mosaic.version = 11 : i64} {
  func.func @_trans_kernel(%arg0: memref<8x32xf32, #tpu.memory_space<vmem>>, %arg1: memref<2x32xf32, #tpu.memory_space<vmem>>, %arg2: memref<2xf32, #tpu.memory_space<smem>>, %arg3: memref<8x2xf32, #tpu.memory_space<vmem>>) attributes {dimension_semantics = [], scalar_prefetch = 0 : i64, scratch_operands = 0 : i64, tpu.core_type = #tpu.core_type<tc>} {
    %c0 = arith.constant 0 : index
    %c0_0 = arith.constant 0 : index
    %0 = vector.load %arg0[%c0, %c0_0] : memref<8x32xf32, #tpu.memory_space<vmem>>, vector<8x32xf32>
    %c0_1 = arith.constant 0 : index
    %c0_2 = arith.constant 0 : index
    %1 = vector.load %arg1[%c0_1, %c0_2] : memref<2x32xf32, #tpu.memory_space<vmem>>, vector<1x32xf32>
    %2 = vector.shape_cast %1 : vector<1x32xf32> to vector<32xf32>
    %3 = vector.shape_cast %2 : vector<32xf32> to vector<1x32xf32>
    %4 = vector.broadcast %3 : vector<1x32xf32> to vector<8x32xf32>
    %5 = arith.mulf %0, %4 : vector<8x32xf32>
    %cst = arith.constant dense<0.000000e+00> : vector<8xf32>
    %6 = vector.multi_reduction <add>, %5, %cst [1] : vector<8x32xf32> to vector<8xf32>
    %7 = vector.shape_cast %6 : vector<8xf32> to vector<8x1xf32>
    %c0_3 = arith.constant 0 : index
    %8 = memref.load %arg2[%c0_3] : memref<2xf32, #tpu.memory_space<smem>>
    %9 = vector.broadcast %8 : f32 to vector<8x1xf32>
    %10 = arith.addf %7, %9 : vector<8x1xf32>
    %c1 = arith.constant 1 : index
    %c0_4 = arith.constant 0 : index
    %11 = vector.load %arg1[%c1, %c0_4] : memref<2x32xf32, #tpu.memory_space<vmem>>, vector<1x32xf32>
    %12 = vector.shape_cast %11 : vector<1x32xf32> to vector<32xf32>
    %13 = vector.shape_cast %12 : vector<32xf32> to vector<1x32xf32>
    %14 = vector.broadcast %13 : vector<1x32xf32> to vector<8x32xf32>
    %15 = arith.mulf %0, %14 : vector<8x32xf32>
    %cst_5 = arith.constant dense<0.000000e+00> : vector<8xf32>
    %16 = vector.multi_reduction <add>, %15, %cst_5 [1] : vector<8x32xf32> to vector<8xf32>
    %17 = vector.shape_cast %16 : vector<8xf32> to vector<8x1xf32>
    %c1_6 = arith.constant 1 : index
    %18 = memref.load %arg2[%c1_6] : memref<2xf32, #tpu.memory_space<smem>>
    %19 = vector.broadcast %18 : f32 to vector<8x1xf32>
    %20 = arith.addf %17, %19 : vector<8x1xf32>
    %21 = tpu.concatenate %10, %20 in 1 : vector<8x1xf32>, vector<8x1xf32> -> vector<8x2xf32>
    %c0_7 = arith.constant 0 : index
    %c0_8 = arith.constant 0 : index
    %22 = vector.load %arg3[%c0_7, %c0_8] : memref<8x2xf32, #tpu.memory_space<vmem>>, vector<8x2xf32>
    tpu.vector_store %arg3[%c0_7, %c0_8], %21 {strides = array<i32>} : memref<8x2xf32, #tpu.memory_space<vmem>>, vector<8x2xf32>,
    return
  }
}

</mosaic_0001>

<llo_original>
// kernel: tpu_custom_call.1
$region0: #{tpu_custom_call.1}
  #allocation0 [shape = 'u32[]', space=smem, size = 0x4, offset = 0x4, fixed_abs, tag = 'smem constant byte address 0x4 - core index']
  #allocation1 [shape = 'u32[72,128]{1,0:T(1,128)}', space=vmem, size = 0x9000, scoped, tag = 'internal scratch']
  %s0 = inlined_call_operand.hbm [shape: f32[8,32], index: 0, kind: input, shape index: {}]
  %s1 = inlined_call_operand.hbm [shape: f32[2,32], index: 1, kind: input, shape index: {}]
  %s2 = inlined_call_operand.vmem [shape: f32[2], index: 2, kind: input, shape index: {}]
  %s3 = inlined_call_operand.vmem [shape: f32[8,2], index: 3, kind: output, shape index: {}]
  %s4 = sld [smem:[#allocation0]]
  $region34: #{tpu_custom_call.1} parent=0
    _
  %s6 = ssub.s32 1, %s4
  %s7 = scalar_select 0, %s6, %s4
  $region1: #{tpu_custom_call.1} parent=0
    #allocation2 [shape = 'u8[4096]{0}', space=vmem, size = 0x1000, scoped, tag = 'input window, operand 0, single buffered']
    #allocation3 [shape = 's32[1]{0}', space=sflag, size = 0x4, scoped, tag = 'scoped memory for tpu_custom_call.1']
    #allocation4 [shape = 's32[1]{0}', space=sflag, size = 0x4, scoped, tag = 'scoped memory for tpu_custom_call.1']
    #allocation5 [shape = 'u8[1024]{0}', space=vmem, size = 0x400, scoped, tag = 'input window, operand 1, single buffered']
    #allocation6 [shape = 's32[1]{0}', space=sflag, size = 0x4, scoped, tag = 'scoped memory for tpu_custom_call.1']
    #allocation7 [shape = 'u8[512]{0}', space=smem, size = 0x200, scoped, tag = 'input window, operand 2, single buffered']
    %8 = vsyncpa [#allocation3], 0
    %9 = vsyncpa [#allocation6], 0
    %10 = vsyncpa [#allocation4], 0
    // Predicated region
    $region2: #{tpu_custom_call.1} parent=1 // pred_check
      _
    $region3: #{tpu_custom_call.1} parent=1 // pred_check_branch
      %12 = sbr.rel (0) target = $region5
    $region4: #{tpu_custom_call.1} parent=1 // pred_region
      %14 = vsyncadd [#allocation3], 0
      %s16 = sshll.u32 %s0, 4
      %s17 = int_to_ptr.hbm [resolvable:$true] %s16
      %s18 = sshll.u32 [#allocation2], 4
      %s19 = int_to_ptr.vmem [resolvable:$true] %s18
      %21 = dma.hbm_to_vmem [thread:$0]  %s17, 128, %s19, [#allocation3]
    $region5: #{tpu_custom_call.1} parent=1 // pred_fallthru
      _
    // Predicated region
    $region6: #{tpu_custom_call.1} parent=1 // pred_check
      _
    $region7: #{tpu_custom_call.1} parent=1 // pred_check_branch
      %23 = sbr.rel (0) target = $region9
    $region8: #{tpu_custom_call.1} parent=1 // pred_region
      %25 = vsyncadd [#allocation6], 0
      %s27 = sshll.u32 %s1, 4
      %s28 = int_to_ptr.hbm [resolvable:$true] %s27
      %s29 = sshll.u32 [#allocation5], 4
      %s30 = int_to_ptr.vmem [resolvable:$true] %s29
      %32 = dma.hbm_to_vmem [thread:$0]  %s28, 32, %s30, [#allocation6]
    $region9: #{tpu_custom_call.1} parent=1 // pred_fallthru
      _
    // Predicated region
    $region10: #{tpu_custom_call.1} parent=1 // pred_check
      _
    $region11: #{tpu_custom_call.1} parent=1 // pred_check_branch
      %34 = sbr.rel (0) target = $region13
    $region12: #{tpu_custom_call.1} parent=1 // pred_region
      %36 = vsyncadd [#allocation4], 0
      %s38 = sshll.u32 %s2, 4
      %s39 = int_to_ptr.vmem [resolvable:$true] %s38
      %41 = dma.vmem_to_smem %s39, 16, [#allocation7], [#allocation4]
    $region13: #{tpu_custom_call.1} parent=1 // pred_fallthru
      _
    // Predicated region
    $region14: #{tpu_custom_call.1} parent=1 // pred_check
      _
    $region15: #{tpu_custom_call.1} parent=1 // pred_check_branch
      %43 = sbr.rel (0) target = $region17
    $region16: #{tpu_custom_call.1} parent=1 // pred_region
      %45 = dma.done [#allocation3], 128
    $region17: #{tpu_custom_call.1} parent=1 // pred_fallthru
      _
    // Predicated region
    $region18: #{tpu_custom_call.1} parent=1 // pred_check
      _
    $region19: #{tpu_custom_call.1} parent=1 // pred_check_branch
      %47 = sbr.rel (0) target = $region21
    $region20: #{tpu_custom_call.1} parent=1 // pred_region
      %49 = dma.done [#allocation6], 32
    $region21: #{tpu_custom_call.1} parent=1 // pred_fallthru
      _
    // Predicated region
    $region22: #{tpu_custom_call.1} parent=1 // pred_check
      _
    $region23: #{tpu_custom_call.1} parent=1 // pred_check_branch
      %51 = sbr.rel (0) target = $region25
    $region24: #{tpu_custom_call.1} parent=1 // pred_region
      %53 = dma.done [#allocation4], 16
    $region25: #{tpu_custom_call.1} parent=1 // pred_fallthru
      _
    %54 = sfence
    %v55 = vld [vmem:[#allocation2] sm:$0xff]
    %v56 = vld [vmem:[#allocation5] sm:$0x1]
    %v57 = vperm.slane %v56, 0
    %v58 = vmul.f32 %v55, %v57
    %vm59 = vcmask 261120
    %v60 = vsel %vm59, %v58, 0.0
    %61 = vadd.xlane.f32.xlu0 %v60
    %v62 = vpop.xlane.xlu0 %61
    %s63 = sld [smem:[#allocation7]]
    %v64 = vstv %s63
    %v65 = vadd.f32 %v62, %v64
    %v66 = vld [vmem:[#allocation5 + $0x1] sm:$0x1]
    %v67 = vperm.slane %v66, 0
    %v68 = vmul.f32 %v55, %v67
    %v69 = vsel %vm59, %v68, 0.0
    %70 = vadd.xlane.f32.xlu0 %v69
    %v71 = vpop.xlane.xlu0 %70
    %s72 = sld [smem:[#allocation7 + $0x1]]
    %v73 = vstv %s72
    %v74 = vadd.f32 %v71, %v73
    %vm75 = vcmask 7168
    %v76 = vsel %vm75, %v65, %v74
    %vm77 = vcmask 15360
    %78 = vst.msk [vmem:[%s3] sm:$0xff] %vm77, %v76
    // Predicated region
    $region26: #{tpu_custom_call.1} parent=1 // pred_check
      _
    $region27: #{tpu_custom_call.1} parent=1 // pred_check_branch
      %80 = sbr.rel (0) target = $region29
    $region28: #{tpu_custom_call.1} parent=1 // pred_region
      _
    $region29: #{tpu_custom_call.1} parent=1 // pred_fallthru
      _
    // Predicated region
    $region30: #{tpu_custom_call.1} parent=1 // pred_check
      _
    $region31: #{tpu_custom_call.1} parent=1 // pred_check_branch
      %82 = sbr.rel (0) target = $region33
    $region32: #{tpu_custom_call.1} parent=1 // pred_region
      _
    $region33: #{tpu_custom_call.1} parent=1 // pred_fallthru
      _
    %83 = vsyncpa [#allocation3], 1
    %84 = vsyncpa [#allocation6], 1
    %85 = vsyncpa [#allocation4], 1

</llo_original>
